<compile_context>
chip_gen: v7x
topology: tpu7x:2x2x1
jax: 0.10.0
libtpu: 0.0.40
codegen_flags: <defaults>
</compile_context>

<pallas_src>
import functools
import math

import jax
import jax.numpy as jnp
from jax.experimental import pallas as pl
from jax.experimental.pallas import tpu as pltpu

ACT_DTYPE = jnp.bfloat16


@functools.lru_cache(maxsize=None)
def _vmem_limit():
    """Per-generation scoped-VMEM limit (48 MiB on 64 MiB parts, 100 MiB on 128 MiB parts)."""
    cap = None
    try:
        info = pltpu.get_tpu_info()
        cap = getattr(info, "vmem_capacity_bytes", None)
    except Exception:
        cap = None
    if cap is None or cap <= 64 * 1024 * 1024:
        return 48 * 1024 * 1024          # v7x-class (64 MiB physical) or unknown: stay safe
    return 100 * 1024 * 1024             # v5e / v6e (128 MiB physical)


def _pick_tile(dim, target, align):
    """Largest tile <= target that is a multiple of `align` and divides dim;
    falls back to the full dim (always a legal block) for small / awkward sizes."""
    if dim <= target:
        return dim
    t = (target // align) * align
    while t >= align:
        if dim % t == 0:
            return t
        t -= align
    return dim


# --------------------------------------------------------------------------- dense

def _dense_kernel(x_ref, w_ref, b_ref, o_ref, acc_ref, *, activation):
    k = pl.program_id(2)

    @pl.when(k == 0)
    def _():
        acc_ref[...] = jnp.zeros_like(acc_ref)

    acc_ref[...] += jnp.dot(x_ref[...], w_ref[...],
                            preferred_element_type=jnp.float32)

    @pl.when(k == pl.num_programs(2) - 1)
    def _():
        y = acc_ref[...] + b_ref[...].astype(jnp.float32)
        if activation == "gelu":
            # tanh-approx GELU: EUP-friendly on all generations (v5e has the weakest EUP);
            # ~1e-3 abs error vs the reference's exact erf GELU.
            y = jax.nn.gelu(y, approximate=True)
        o_ref[...] = y.astype(o_ref.dtype)


def dense(x, w, b, activation="none", *, tm=1024, tn=1024, tk=512):
    """y = act(x @ w + b), tiled (M/tm, N/tn, K/tk) with an f32 VMEM accumulator."""
    M, K = x.shape
    N = w.shape[1]
    tm = _pick_tile(M, tm, 16)      # bf16: 16 rows per packed sublane group
    tn = _pick_tile(N, tn, 128)
    tk = _pick_tile(K, tk, 128)
    return pl.pallas_call(
        functools.partial(_dense_kernel, activation=activation),
        grid=(M // tm, N // tn, K // tk),
        in_specs=[pl.BlockSpec((tm, tk), lambda i, j, k: (i, k)),
                  pl.BlockSpec((tk, tn), lambda i, j, k: (k, j)),
                  pl.BlockSpec((1, tn), lambda i, j, k: (0, j))],
        out_specs=pl.BlockSpec((tm, tn), lambda i, j, k: (i, j)),
        out_shape=jax.ShapeDtypeStruct((M, N), x.dtype),
        scratch_shapes=[pltpu.VMEM((tm, tn), jnp.float32)],
        compiler_params=pltpu.CompilerParams(
            dimension_semantics=("parallel", "parallel", "arbitrary"),
            vmem_limit_bytes=_vmem_limit()),
    )(x, w, b.reshape(1, N))


# ------------------------------------------------ dense + residual-add + LayerNorm (fused)

def _dense_ln_kernel(x_ref, w_ref, b_ref, res_ref, g_ref, be_ref, o_ref, acc_ref, *, eps):
    k = pl.program_id(1)

    @pl.when(k == 0)
    def _():
        acc_ref[...] = jnp.zeros_like(acc_ref)

    acc_ref[...] += jnp.dot(x_ref[...], w_ref[...],
                            preferred_element_type=jnp.float32)

    @pl.when(k == pl.num_programs(1) - 1)
    def _():
        y = acc_ref[...] + b_ref[...].astype(jnp.float32) + res_ref[...].astype(jnp.float32)
        mu = jnp.mean(y, axis=-1, keepdims=True)
        var = jnp.mean(jnp.square(y - mu), axis=-1, keepdims=True)
        y = (y - mu) * jax.lax.rsqrt(var + eps)
        y = y * g_ref[...].astype(jnp.float32) + be_ref[...].astype(jnp.float32)
        o_ref[...] = y.astype(o_ref.dtype)


def dense_add_layernorm(x, w, b, residual, gamma, beta, *, eps, tm=1024, tk=512):
    """LayerNorm(x @ w + b + residual): output tile spans full N (=hidden), so the
    residual-add + LN happen in the matmul finalize with no extra HBM round trip."""
    M, K = x.shape
    N = w.shape[1]
    tm = _pick_tile(M, tm, 16)
    tk = _pick_tile(K, tk, 128)
    row_full = pl.BlockSpec((tm, N), lambda i, k: (i, 0))
    vec_full = pl.BlockSpec((1, N), lambda i, k: (0, 0))
    return pl.pallas_call(
        functools.partial(_dense_ln_kernel, eps=eps),
        grid=(M // tm, K // tk),
        in_specs=[pl.BlockSpec((tm, tk), lambda i, k: (i, k)),
                  pl.BlockSpec((tk, N), lambda i, k: (k, 0)),
                  vec_full,          # bias
                  row_full,          # residual (resident across k: block index ignores k)
                  vec_full,          # gamma
                  vec_full],         # beta
        out_specs=row_full,
        out_shape=jax.ShapeDtypeStruct((M, N), x.dtype),
        scratch_shapes=[pltpu.VMEM((tm, N), jnp.float32)],
        compiler_params=pltpu.CompilerParams(
            dimension_semantics=("parallel", "arbitrary"),
            vmem_limit_bytes=_vmem_limit()),
    )(x, w, b.reshape(1, N), residual, gamma.reshape(1, N), beta.reshape(1, N))


# --------------------------------------------------------------------------- layernorm (embeddings)

def _layernorm_kernel(x_ref, g_ref, b_ref, s_ref, o_ref, *, eps):
    x = x_ref[...].astype(jnp.float32)
    mu = jnp.mean(x, axis=-1, keepdims=True)
    var = jnp.mean(jnp.square(x - mu), axis=-1, keepdims=True)
    y = (x - mu) * jax.lax.rsqrt(var + eps)
    y = y * g_ref[...].astype(jnp.float32) + b_ref[...].astype(jnp.float32)
    y = y * s_ref[...].astype(jnp.float32)          # fused DeBERTa embedding-mask multiply
    o_ref[...] = y.astype(o_ref.dtype)


def layernorm_masked(x, gamma, beta, row_scale, *, eps, tm=1024):
    M, H = x.shape
    tm = _pick_tile(M, tm, 16)
    row_spec = pl.BlockSpec((tm, H), lambda i: (i, 0))
    vec_spec = pl.BlockSpec((1, H), lambda i: (0, 0))
    return pl.pallas_call(
        functools.partial(_layernorm_kernel, eps=eps),
        grid=(M // tm,),
        in_specs=[row_spec, vec_spec, vec_spec,
                  pl.BlockSpec((tm, 1), lambda i: (i, 0))],
        out_specs=row_spec,
        out_shape=jax.ShapeDtypeStruct((M, H), x.dtype),
        compiler_params=pltpu.CompilerParams(
            dimension_semantics=("parallel",),
            vmem_limit_bytes=_vmem_limit()),
    )(x, gamma.reshape(1, H), beta.reshape(1, H), row_scale)


# --------------------------------------------------------------------------- attention

def _attention_kernel(qkv_ref, bias_ref, o_ref, *, heads_per_step, head_dim, hidden,
                      seq_len, kv_tile, scale):
    # Grid = (batch, head-pair). The (S, 3H) qkv block, the bias block and the (S, H) output
    # block all have head-invariant index_maps, so they stay resident in VMEM across the
    # head axis (marked "arbitrary"); each head-pair step fills a disjoint, lane-aligned
    # 128-wide (at real sizes) column slab of the output.
    w = heads_per_step * head_dim
    q_lo = pl.multiple_of(pl.program_id(1) * w, w)
    k_lo = pl.multiple_of(hidden + pl.program_id(1) * w, w)
    v_lo = pl.multiple_of(2 * hidden + pl.program_id(1) * w, w)
    num_kv = seq_len // kv_tile

    # Load the head-pair Q slab once (lane-dense at real sizes) and fold in 1/sqrt(D)
    # here (S x w mults) instead of scaling the S x S scores.
    q_pair = qkv_ref[:, pl.ds(q_lo, w)] * jnp.asarray(scale, dtype=qkv_ref.dtype)

    ctxs = []
    for i in range(heads_per_step):                 # tiny static loop (<=2 iterations)
        q_h = q_pair[:, i * head_dim:(i + 1) * head_dim]          # split pair in-register

        def kv_step(c, carry, _i=i, _q=q_h):
            m_p, l_p, acc_p = carry
            row = pl.multiple_of(c * kv_tile, kv_tile)
            k_pair = qkv_ref[pl.ds(row, kv_tile), pl.ds(k_lo, w)]  # (tkv, w) lane-dense slab
            v_pair = qkv_ref[pl.ds(row, kv_tile), pl.ds(v_lo, w)]
            k_h = k_pair[:, _i * head_dim:(_i + 1) * head_dim]
            v_h = v_pair[:, _i * head_dim:(_i + 1) * head_dim]
            s = jax.lax.dot_general(_q, k_h, (((1,), (1,)), ((), ())),
                                    preferred_element_type=jnp.float32)    # (S, tkv) f32
            s = s + bias_ref[0, :, pl.ds(row, kv_tile)]            # (1, tkv) additive key mask
            m_n = jnp.maximum(m_p, jnp.max(s, axis=-1, keepdims=True))
            alpha = jnp.exp(m_p - m_n)
            p = jnp.exp(s - m_n)
            l_n = alpha * l_p + jnp.sum(p, axis=-1, keepdims=True)
            acc_n = alpha * acc_p + jnp.dot(p.astype(v_h.dtype), v_h,
                                            preferred_element_type=jnp.float32)
            return m_n, l_n, acc_n

        init = (jnp.full((seq_len, 1), -jnp.inf, jnp.float32),
                jnp.zeros((seq_len, 1), jnp.float32),
                jnp.zeros((seq_len, head_dim), jnp.float32))
        _, l_f, acc_f = jax.lax.fori_loop(0, num_kv, kv_step, init)
        ctxs.append(acc_f * pl.reciprocal(l_f, approx=True))

    ctx = ctxs[0] if heads_per_step == 1 else jnp.concatenate(ctxs, axis=-1)
    # Single lane-dense (S, 128-at-real-sizes) store per head-pair, in [B*S, H] layout.
    o_ref[:, pl.ds(q_lo, w)] = ctx.astype(o_ref.dtype)


def multi_head_attention(qkv, mask_bias, *, num_heads, head_dim, hidden, seq_len, scale,
                         kv_tile=512):
    BS = qkv.shape[0]
    B = BS // seq_len
    hp = 2 if num_heads % 2 == 0 else 1        # head pairs -> 128-lane slabs at D=64
    kv_tile = _pick_tile(seq_len, kv_tile, 128)
    return pl.pallas_call(
        functools.partial(_attention_kernel, heads_per_step=hp, head_dim=head_dim,
                          hidden=hidden, seq_len=seq_len, kv_tile=kv_tile, scale=scale),
        grid=(B, num_heads // hp),
        in_specs=[pl.BlockSpec((seq_len, 3 * hidden), lambda b, h: (b, 0)),
                  pl.BlockSpec((1, 1, seq_len), lambda b, h: (b, 0, 0))],
        out_specs=pl.BlockSpec((seq_len, hidden), lambda b, h: (b, 0)),
        out_shape=jax.ShapeDtypeStruct((BS, hidden), qkv.dtype),
        compiler_params=pltpu.CompilerParams(
            # batch axis parallel (2-TC balance on v7x); head axis arbitrary because the
            # output block stays resident and is filled slab-by-slab across it.
            dimension_semantics=("parallel", "arbitrary"),
            vmem_limit_bytes=_vmem_limit()),
    )(qkv, mask_bias)


# --------------------------------------------------------------------------- model

CFG = dict(vocab_size=100, hidden=32, num_heads=2, num_layers=2,
           intermediate=64, max_pos=16, num_labels=2, eps=1e-7)


def init_params(key, cfg):
    H, I = cfg["hidden"], cfg["intermediate"]
    state = {"k": key}

    def nxt():
        state["k"], sub = jax.random.split(state["k"])
        return sub

    def dense_p(din, dout):
        return {"w": (jax.random.normal(nxt(), (din, dout), jnp.float32) * 0.02).astype(ACT_DTYPE),
                "b": jnp.zeros((dout,), ACT_DTYPE)}

    params = {
        "word_emb": (jax.random.normal(nxt(), (cfg["vocab_size"], H), jnp.float32) * 0.02).astype(ACT_DTYPE),
        "pos_emb": (jax.random.normal(nxt(), (cfg["max_pos"], H), jnp.float32) * 0.02).astype(ACT_DTYPE),
        "emb_ln_g": jnp.ones((H,), ACT_DTYPE),
        "emb_ln_b": jnp.zeros((H,), ACT_DTYPE),
        "layers": [],
        "pooler": dense_p(H, H),
        "classifier": dense_p(H, cfg["num_labels"]),
    }
    for _ in range(cfg["num_layers"]):
        params["layers"].append({
            "qkv": dense_p(H, 3 * H),                  # fused Q/K/V projection
            "attn_out": dense_p(H, H),
            "attn_ln_g": jnp.ones((H,), ACT_DTYPE), "attn_ln_b": jnp.zeros((H,), ACT_DTYPE),
            "ffn_in": dense_p(H, I), "ffn_out": dense_p(I, H),
            "ffn_ln_g": jnp.ones((H,), ACT_DTYPE), "ffn_ln_b": jnp.zeros((H,), ACT_DTYPE),
        })
    return params


def deberta_classifier_forward(params, input_ids, attention_mask, labels=None, cfg=CFG):
    B, S = input_ids.shape
    H = cfg["hidden"]
    NH = cfg["num_heads"]
    D = H // NH
    eps = cfg["eps"]

    mask_f = attention_mask.astype(jnp.float32)                 # [B, S] (1 keep / 0 pad)
    mask_bias = ((1.0 - mask_f) * (-1e9)).reshape(B, 1, S)      # additive key mask, f32
    row_scale = mask_f.reshape(B * S, 1)                        # DeBERTa zeroes padded embeddings

    # ---- embeddings: gather in JAX, LayerNorm (+ fused mask multiply) in Pallas ----
    pos = jnp.arange(S)
    emb = params["word_emb"][input_ids] + params["pos_emb"][pos][None, :, :]
    x = layernorm_masked(emb.reshape(B * S, H).astype(ACT_DTYPE),
                         params["emb_ln_g"], params["emb_ln_b"],
                         row_scale, eps=eps)                    # [B*S, H] bf16

    scale = 1.0 / math.sqrt(D)
    # TODO(synk): DeBERTa's disentangled (content<->relative-position) attention bias and
    # rel_embeddings are not implemented; standard scaled-dot-product attention is used.
    # TODO(synk): StableDropout is omitted (eval-mode inference only).

    # ---- encoder layers (activations stay [B*S, H]; no head transposes in JAX glue) ----
    for lp in params["layers"]:
        qkv = dense(x, lp["qkv"]["w"], lp["qkv"]["b"])          # [B*S, 3H]
        ctx = multi_head_attention(qkv, mask_bias, num_heads=NH, head_dim=D,
                                   hidden=H, seq_len=S, scale=scale)
        # attn-out projection + residual + LayerNorm fused in one kernel
        x = dense_add_layernorm(ctx, lp["attn_out"]["w"], lp["attn_out"]["b"],
                                x, lp["attn_ln_g"], lp["attn_ln_b"], eps=eps)
        ffn = dense(x, lp["ffn_in"]["w"], lp["ffn_in"]["b"], activation="gelu")
        # ffn-out projection + residual + LayerNorm fused in one kernel
        x = dense_add_layernorm(ffn, lp["ffn_out"]["w"], lp["ffn_out"]["b"],
                                x, lp["ffn_ln_g"], lp["ffn_ln_b"], eps=eps)

    # ---- ContextPooler (CLS token) + classifier head: tiny (num_labels=2 -> sub-128-lane
    # output would force masked stores), so kept in plain JAX in f32 ----
    cls = x.reshape(B, S, H)[:, 0, :].astype(jnp.float32)
    pooled = jax.nn.gelu(cls @ params["pooler"]["w"].astype(jnp.float32)
                         + params["pooler"]["b"].astype(jnp.float32), approximate=False)
    logits = (pooled @ params["classifier"]["w"].astype(jnp.float32)
              + params["classifier"]["b"].astype(jnp.float32))

    loss = None
    if labels is not None:
        logp = jax.nn.log_softmax(logits, axis=-1)
        loss = -jnp.mean(jnp.take_along_axis(logp, labels[:, None], axis=-1))
    return loss, logits


# --------------------------------------------------------------------------- main

if __name__ == "__main__":
    key = jax.random.PRNGKey(0)
    pkey, ikey, lkey = jax.random.split(key, 3)
    params = init_params(pkey, CFG)

    B, S = 2, 8
    input_ids = jax.random.randint(ikey, (B, S), 0, CFG["vocab_size"], dtype=jnp.int32)
    attention_mask = jnp.array([[1, 1, 1, 1, 1, 1, 0, 0],
                                [1, 1, 1, 1, 1, 1, 1, 1]], dtype=jnp.int32)
    labels = jax.random.randint(lkey, (B,), 0, CFG["num_labels"], dtype=jnp.int32)

    loss, logits = deberta_classifier_forward(params, input_ids, attention_mask, labels)
    jax.block_until_ready((loss, logits))
    assert logits.shape == (B, CFG["num_labels"])
    assert loss.shape == ()
    assert bool(jnp.isfinite(loss)) and bool(jnp.all(jnp.isfinite(logits)))
    print("KERNEL_OK")
</pallas_src>

<mosaic_0001>
module attributes {stable_mosaic.version = 11 : i64} {
  func.func @_layernorm_kernel(%arg0: i32, %arg1: memref<16x32xbf16, #tpu.memory_space<vmem>>, %arg2: memref<1x32xbf16, #tpu.memory_space<vmem>>, %arg3: memref<1x32xbf16, #tpu.memory_space<vmem>>, %arg4: memref<16x1xf32, #tpu.memory_space<vmem>>, %arg5: memref<16x32xbf16, #tpu.memory_space<vmem>>) attributes {dimension_semantics = [#tpu.dimension_semantics<parallel>], iteration_bounds = array<i64: 1>, scalar_prefetch = 0 : i64, scratch_operands = 0 : i64, tpu.core_type = #tpu.core_type<tc>, window_params = [{transform_indices = @transform_0, window_bounds = array<i64: 16, 32>}, {pipeline_mode = #tpu.pipeline_mode<synchronous>, transform_indices = @transform_1, window_bounds = array<i64: 1, 32>}, {pipeline_mode = #tpu.pipeline_mode<synchronous>, transform_indices = @transform_2, window_bounds = array<i64: 1, 32>}, {transform_indices = @transform_3, window_bounds = array<i64: 16, 1>}, {transform_indices = @transform_4, window_bounds = array<i64: 16, 32>}]} {
    %c0 = arith.constant 0 : index
    %c0_0 = arith.constant 0 : index
    %0 = vector.load %arg1[%c0, %c0_0] : memref<16x32xbf16, #tpu.memory_space<vmem>>, vector<16x32xbf16>
    %1 = arith.extf %0 : vector<16x32xbf16> to vector<16x32xf32>
    %cst = arith.constant dense<0.000000e+00> : vector<16xf32>
    %2 = vector.multi_reduction <add>, %1, %cst [1] : vector<16x32xf32> to vector<16xf32>
    %3 = vector.shape_cast %2 : vector<16xf32> to vector<16x1xf32>
    %cst_1 = arith.constant 3.200000e+01 : f32
    %4 = vector.broadcast %cst_1 : f32 to vector<16x1xf32>
    %5 = arith.divf %3, %4 : vector<16x1xf32>
    %6 = vector.broadcast %5 : vector<16x1xf32> to vector<16x32xf32>
    %7 = arith.subf %1, %6 : vector<16x32xf32>
    %8 = arith.mulf %7, %7 : vector<16x32xf32>
    %cst_2 = arith.constant dense<0.000000e+00> : vector<16xf32>
    %9 = vector.multi_reduction <add>, %8, %cst_2 [1] : vector<16x32xf32> to vector<16xf32>
    %10 = vector.shape_cast %9 : vector<16xf32> to vector<16x1xf32>
    %cst_3 = arith.constant 3.200000e+01 : f32
    %11 = vector.broadcast %cst_3 : f32 to vector<16x1xf32>
    %12 = arith.divf %10, %11 : vector<16x1xf32>
    %13 = vector.broadcast %5 : vector<16x1xf32> to vector<16x32xf32>
    %14 = arith.subf %1, %13 : vector<16x32xf32>
    %cst_4 = arith.constant 1.000000e-07 : f32
    %15 = vector.broadcast %cst_4 : f32 to vector<16x1xf32>
    %16 = arith.addf %12, %15 : vector<16x1xf32>
    %17 = math.rsqrt %16 : vector<16x1xf32>
    %18 = vector.broadcast %17 : vector<16x1xf32> to vector<16x32xf32>
    %19 = arith.mulf %14, %18 : vector<16x32xf32>
    %c0_5 = arith.constant 0 : index
    %c0_6 = arith.constant 0 : index
    %20 = vector.load %arg2[%c0_5, %c0_6] : memref<1x32xbf16, #tpu.memory_space<vmem>>, vector<1x32xbf16>
    %21 = arith.extf %20 : vector<1x32xbf16> to vector<1x32xf32>
    %22 = vector.broadcast %21 : vector<1x32xf32> to vector<16x32xf32>
    %23 = arith.mulf %19, %22 : vector<16x32xf32>
    %c0_7 = arith.constant 0 : index
    %c0_8 = arith.constant 0 : index
    %24 = vector.load %arg3[%c0_7, %c0_8] : memref<1x32xbf16, #tpu.memory_space<vmem>>, vector<1x32xbf16>
    %25 = arith.extf %24 : vector<1x32xbf16> to vector<1x32xf32>
    %26 = vector.broadcast %25 : vector<1x32xf32> to vector<16x32xf32>
    %27 = arith.addf %23, %26 : vector<16x32xf32>
    %c0_9 = arith.constant 0 : index
    %c0_10 = arith.constant 0 : index
    %28 = vector.load %arg4[%c0_9, %c0_10] : memref<16x1xf32, #tpu.memory_space<vmem>>, vector<16x1xf32>
    %29 = vector.broadcast %28 : vector<16x1xf32> to vector<16x32xf32>
    %30 = arith.mulf %27, %29 : vector<16x32xf32>
    %31 = arith.truncf %30 : vector<16x32xf32> to vector<16x32xbf16>
    %c0_11 = arith.constant 0 : index
    %c0_12 = arith.constant 0 : index
    %32 = vector.load %arg5[%c0_11, %c0_12] : memref<16x32xbf16, #tpu.memory_space<vmem>>, vector<16x32xbf16>
    tpu.vector_store %arg5[%c0_11, %c0_12], %31 {strides = array<i32>} : memref<16x32xbf16, #tpu.memory_space<vmem>>, vector<16x32xbf16>,
    return
  }
  func.func @transform_0(%arg0: i32) -> (i32, i32) {
    %c0_i32 = arith.constant 0 : i32
    %c0_i32_0 = arith.constant 0 : i32
    return %arg0, %c0_i32 : i32, i32
  }
  func.func @transform_1(%arg0: i32) -> (i32, i32) {
    %c0_i32 = arith.constant 0 : i32
    %c0_i32_0 = arith.constant 0 : i32
    %c0_i32_1 = arith.constant 0 : i32
    return %c0_i32, %c0_i32_0 : i32, i32
  }
  func.func @transform_2(%arg0: i32) -> (i32, i32) {
    %c0_i32 = arith.constant 0 : i32
    %c0_i32_0 = arith.constant 0 : i32
    %c0_i32_1 = arith.constant 0 : i32
    return %c0_i32, %c0_i32_0 : i32, i32
  }
  func.func @transform_3(%arg0: i32) -> (i32, i32) {
    %c0_i32 = arith.constant 0 : i32
    %c0_i32_0 = arith.constant 0 : i32
    return %arg0, %c0_i32 : i32, i32
  }
  func.func @transform_4(%arg0: i32) -> (i32, i32) {
    %c0_i32 = arith.constant 0 : i32
    %c0_i32_0 = arith.constant 0 : i32
    return %arg0, %c0_i32 : i32, i32
  }
}

</mosaic_0001>

<llo_original>
// kernel: tpu_custom_call.1
$region0: #{tpu_custom_call.1}
  #allocation0 [shape = 'u32[]', space=smem, size = 0x4, offset = 0x4, fixed_abs, tag = 'smem constant byte address 0x4 - core index']
  #allocation1 [shape = 'u32[144,128]{1,0:T(1,128)}', space=vmem, size = 0x12000, scoped, tag = 'internal scratch']
  %s0 = inlined_call_operand.vmem [shape: bf16[16,32], index: 0, kind: input, shape index: {}]
  %s1 = inlined_call_operand.vmem [shape: bf16[1,32], index: 1, kind: input, shape index: {}]
  %s2 = inlined_call_operand.vmem [shape: bf16[1,32], index: 2, kind: input, shape index: {}]
  %s3 = inlined_call_operand.vmem [shape: f32[16,1], index: 3, kind: input, shape index: {}]
  %s4 = inlined_call_operand.hbm [shape: bf16[16,32], index: 4, kind: output, shape index: {}]
  %s5 = sld [smem:[#allocation0]]
  $region26: #{tpu_custom_call.1} parent=0
    _
  %s7 = ssub.s32 1, %s5
  %s8 = scalar_select 0, %s7, %s5
  $region1: #{tpu_custom_call.1} parent=0
    #allocation2 [shape = 'u8[4096]{0}', space=vmem, size = 0x1000, scoped, tag = 'output window, operand 0, single buffered']
    #allocation3 [shape = 's32[1]{0}', space=sflag, size = 0x4, scoped, tag = 'scoped memory for tpu_custom_call.1']
    %9 = vsyncpa [#allocation3], 0
    // Predicated region
    $region2: #{tpu_custom_call.1} parent=1 // pred_check
      _
    $region3: #{tpu_custom_call.1} parent=1 // pred_check_branch
      %11 = sbr.rel (0) target = $region5
    $region4: #{tpu_custom_call.1} parent=1 // pred_region
      _
    $region5: #{tpu_custom_call.1} parent=1 // pred_fallthru
      _
    // Predicated region
    $region6: #{tpu_custom_call.1} parent=1 // pred_check
      _
    $region7: #{tpu_custom_call.1} parent=1 // pred_check_branch
      %13 = sbr.rel (0) target = $region9
    $region8: #{tpu_custom_call.1} parent=1 // pred_region
      _
    $region9: #{tpu_custom_call.1} parent=1 // pred_fallthru
      _
    // Predicated region
    $region10: #{tpu_custom_call.1} parent=1 // pred_check
      _
    $region11: #{tpu_custom_call.1} parent=1 // pred_check_branch
      %15 = sbr.rel (0) target = $region13
    $region12: #{tpu_custom_call.1} parent=1 // pred_region
      _
    $region13: #{tpu_custom_call.1} parent=1 // pred_fallthru
      _
    // Predicated region
    $region14: #{tpu_custom_call.1} parent=1 // pred_check
      _
    $region15: #{tpu_custom_call.1} parent=1 // pred_check_branch
      %17 = sbr.rel (0) target = $region17
    $region16: #{tpu_custom_call.1} parent=1 // pred_region
      _
    $region17: #{tpu_custom_call.1} parent=1 // pred_fallthru
      _
    %v18 = vld [vmem:[%s0] sm:$0xf]
    %v19 = vld [vmem:[%s0 + $0x4] sm:$0xf]
    %v20 = vunpack.c.l.bf16 %v18
    %v21 = vunpack.c.l.bf16 %v19
    %vm22 = vcmask 261120
    %v23 = vsel %vm22, %v20, 0.0
    %24 = vadd.xlane.f32.xlu0 %v23
    %v25 = vpop.xlane.xlu0 %24
    %v26 = vsel %vm22, %v21, 0.0
    %27 = vadd.xlane.f32.xlu0 %v26
    %v28 = vpop.xlane.xlu0 %27
    %v29 = vrcp.pop 32.0
    %v30 = vmul.f32 %v25, %v29
    %v31 = vmul.f32 %v28, %v29
    %v32 = vsub.f32 %v20, %v30
    %v33 = vsub.f32 %v21, %v31
    %v34 = vmul.f32 %v32, %v32
    %v35 = vmul.f32 %v33, %v33
    %v36 = vsel %vm22, %v34, 0.0
    %37 = vadd.xlane.f32.xlu0 %v36
    %v38 = vpop.xlane.xlu0 %37
    %v39 = vsel %vm22, %v35, 0.0
    %40 = vadd.xlane.f32.xlu0 %v39
    %v41 = vpop.xlane.xlu0 %40
    %v42 = vmul.f32 %v38, %v29
    %v43 = vmul.f32 %v41, %v29
    %v44 = vadd.f32 %v42, 1e-07
    %v45 = vadd.f32 %v43, 1e-07
    %v46 = vrsqrt.pop %v44
    %v47 = vrsqrt.pop %v45
    %v48 = vmul.f32 %v32, %v46
    %v49 = vmul.f32 %v33, %v47
    %v50 = vld [vmem:[%s1] sm:$0x1]
    %v51 = vunpack.c.l.bf16 %v50
    %v52 = vlaneseq
    %v53 = vshrl.u32 %v52, 7
    %v54 = vsub.s32 0, %v53
    %v55 = vrot.slane %v51, %v54
    %v56 = vmul.f32 %v48, %v55
    %v57 = vmul.f32 %v49, %v55
    %v58 = vld [vmem:[%s2] sm:$0x1]
    %v59 = vunpack.c.l.bf16 %v58
    %v60 = vlaneseq
    %v61 = vshrl.u32 %v60, 7
    %v62 = vsub.s32 0, %v61
    %v63 = vrot.slane %v59, %v62
    %v64 = vadd.f32 %v56, %v63
    %v65 = vadd.f32 %v57, %v63
    %v66 = vld [vmem:[%s3] sm:$0xff]
    %v67 = vld [vmem:[%s3 + $0x8] sm:$0xff]
    %69 = vset.pattern.permute.xlu0 0
    %70 = vperm.xlu0 %69, %v66
    %v71 = vpop.permute.xlu0 %70
    %74 = vset.pattern.permute.xlu0 0
    %75 = vperm.xlu0 %74, %v67
    %v76 = vpop.permute.xlu0 %75
    %v78 = vmul.f32 %v64, %v71
    %v79 = vmul.f32 %v65, %v76
    %v80 = vpack.c.bf16 %v79, %v78
    %v82 = vunpack.c.l.b16 %v80
    %v83 = vunpack.c.h.b16 %v80
    %v84 = vpack.c.b16 %v82, %v82
    %v85 = vpack.c.b16 %v83, %v83
    %vm88 = vcmask 257024
    %89 = vst.msk [vmem:[#allocation2] sm:$0xf] %vm88, %v84
    %90 = vst.msk [vmem:[#allocation2 + $0x4] sm:$0xf] %vm88, %v85
    // Predicated region
    $region18: #{tpu_custom_call.1} parent=1 // pred_check
      _
    $region19: #{tpu_custom_call.1} parent=1 // pred_check_branch
      %92 = sbr.rel (0) target = $region21
    $region20: #{tpu_custom_call.1} parent=1 // pred_region
      %s94 = ssub.s32 128, 128
      %95 = vsyncadd [#allocation3], %s94
      %s96 = sshll.u32 [#allocation2], 4
      %s97 = int_to_ptr.vmem [resolvable:$true] %s96
      %102 = dma.vmem_to_hbm [thread:$0]  %s97, 128, %s4, [#allocation3], 64, 64, 4
    $region21: #{tpu_custom_call.1} parent=1 // pred_fallthru
      _
    // Predicated region
    $region22: #{tpu_custom_call.1} parent=1 // pred_check
      _
    $region23: #{tpu_custom_call.1} parent=1 // pred_check_branch
      %104 = sbr.rel (0) target = $region25
    $region24: #{tpu_custom_call.1} parent=1 // pred_region
      %105 = dma.done [#allocation3], 128
    $region25: #{tpu_custom_call.1} parent=1 // pred_fallthru
      _
    %106 = vsyncpa [#allocation3], 1

</llo_original>
